<compile_context>
chip_gen: v7x
topology: tpu7x:2x2x1
jax: 0.10.0
libtpu: 0.0.40
codegen_flags: <defaults>
</compile_context>

<pallas_src>
import numpy as np
import jax
import jax.numpy as jnp
from jax.experimental import pallas as pl
from jax.experimental.pallas import tpu as pltpu

REG_MAX = 16


def _make_dfl_weights():
    """(8, 64) matrix: rows 0..3 block-diag arange(16), rows 4..7 block-diag ones."""
    w = np.zeros((8, 4 * REG_MAX), dtype=np.float32)
    for blk in range(4):
        sl = slice(blk * REG_MAX, (blk + 1) * REG_MAX)
        w[blk, sl] = np.arange(REG_MAX, dtype=np.float32)   # softmax numerators
        w[blk + 4, sl] = 1.0                                 # softmax denominators
    return w


def _decode_kernel(w_ref, preds_ref, aux_ref, out_ref):
    # w_ref:     (8, 64)            DFL weight matrix (grid-invariant)
    # preds_ref: (1, 64 + C, TA)    fused [regs ; scores] channels-first
    # aux_ref:   (4, TA)            rows = [ax*stride, ay*stride, stride, stride]
    # out_ref:   (1, 4 + C, TA)
    regs = preds_ref[0, : 4 * REG_MAX, :].astype(jnp.float32)   # (64, TA)
    scores = preds_ref[0, 4 * REG_MAX:, :].astype(jnp.float32)  # (C, TA)

    # Numerically-stable softmax: subtracting one per-anchor constant is valid
    # because softmax is invariant to a constant shift within each 16-block.
    m = jnp.max(regs, axis=0, keepdims=True)     # (1, TA)
    e = jnp.exp(regs - m)                        # (64, TA)  (EUP)

    # All 4 expectations + 4 normalizers in one MXU matmul.
    nd = jnp.dot(w_ref[...], e, preferred_element_type=jnp.float32)  # (8, TA)
    # Exact division (approx reciprocal would exceed the 1e-4 tolerance once
    # scaled by stride).
    dist = nd[0:4] / nd[4:8]                     # (4, TA): lt_x, lt_y, rb_x, rb_y

    anc_s = aux_ref[0:2, :]                      # (2, TA): [ax*s, ay*s]
    strides2 = aux_ref[2:4, :]                   # (2, TA): [s, s]

    # Direct sliced stores (static offsets, no lane-axis concatenate).
    out_ref[0, 0:2, :] = anc_s - dist[0:2] * strides2   # x1, y1
    out_ref[0, 2:4, :] = anc_s + dist[2:4] * strides2   # x2, y2
    out_ref[0, 4:, :] = jax.nn.sigmoid(scores)


def onnx_decode(outputs, input_size, class_num=2, tile_a=2048):
    """JAX/Pallas equivalent of Onnx_Decode.forward.

    outputs: list of NCHW arrays of shape (b, 4*REG_MAX + class_num, H, W).
    Returns (b, A, 4 + class_num) with A = sum(H*W).
    """
    input_w, input_h = input_size[0], input_size[1]

    preds_list, aux_list = [], []
    for out in outputs:
        b, cs, in_h, in_w = out.shape
        stride = input_h // in_h
        s = float(stride)
        # Keep channels-first: (b, L, H*W).  No transpose in HBM.
        preds_list.append(out.reshape(b, cs, in_h * in_w))
        # Anchors for this scale (grid_cell_offset = 0.5), pre-scaled by stride,
        # built on the host (static data).
        sx = np.arange(in_w, dtype=np.float32) + 0.5
        sy = np.arange(in_h, dtype=np.float32) + 0.5
        gy, gx = np.meshgrid(sy, sx, indexing="ij")
        hw = in_h * in_w
        aux_list.append(np.stack(
            [gx.reshape(-1) * s,
             gy.reshape(-1) * s,
             np.full((hw,), s, dtype=np.float32),
             np.full((hw,), s, dtype=np.float32)], axis=0))       # (4, HW)

    preds = jnp.concatenate(preds_list, axis=2)       # (b, 64+C, A)
    aux_np = np.concatenate(aux_list, axis=1)         # (4, A)

    b, L, A = preds.shape
    C = L - 4 * REG_MAX
    assert C == class_num, (C, class_num)

    # Anchor tiles: lane axis -> must be a multiple of 128.
    TA = ((tile_a + 127) // 128) * 128
    A128 = ((A + 127) // 128) * 128
    if A128 <= TA:
        TA = A128
    A_pad = ((A + TA - 1) // TA) * TA
    pad = A_pad - A
    if pad:
        preds = jnp.pad(preds, ((0, 0), (0, 0), (0, pad)))
        aux_np = np.pad(aux_np, ((0, 0), (0, pad)))
    aux = jnp.asarray(aux_np)
    w = jnp.asarray(_make_dfl_weights())

    n_tiles = A_pad // TA
    # Anchor tiles outer, batch innermost: W / aux block indices depend only on
    # the anchor tile (or nothing), so they stay resident across batch steps.
    grid = (n_tiles, b)

    out = pl.pallas_call(
        _decode_kernel,
        out_shape=jax.ShapeDtypeStruct((b, 4 + C, A_pad), jnp.float32),
        grid_spec=pltpu.PrefetchScalarGridSpec(
            num_scalar_prefetch=0,
            grid=grid,
            in_specs=[
                pl.BlockSpec((8, 4 * REG_MAX), lambda j, i: (0, 0)),
                pl.BlockSpec((1, L, TA), lambda j, i: (i, 0, j)),
                pl.BlockSpec((4, TA), lambda j, i: (0, j)),
            ],
            out_specs=pl.BlockSpec((1, 4 + C, TA), lambda j, i: (i, 0, j)),
        ),
        compiler_params=pltpu.CompilerParams(
            dimension_semantics=("parallel", "parallel")),
    )(w, preds, aux)

    # Cheap XLA transpose of the small (b, 4+C, A) result back to the
    # PyTorch module's (b, A, 4+C) layout.
    return out[:, :, :A].transpose(0, 2, 1)


def _reference_decode(outputs, input_size, class_num=2):
    """Pure-JAX reference reproducing the PyTorch forward exactly."""
    input_w, input_h = input_size[0], input_size[1]
    preds, anc_list, str_list = [], [], []
    for out in outputs:
        b, cs, in_h, in_w = out.shape
        stride = input_h // in_h
        preds.append(out.reshape(b, cs, in_h * in_w).transpose(0, 2, 1))
        sx = jnp.arange(in_w, dtype=jnp.float32) + 0.5
        sy = jnp.arange(in_h, dtype=jnp.float32) + 0.5
        gy, gx = jnp.meshgrid(sy, sx, indexing="ij")
        anc_list.append(jnp.stack([gx, gy], -1).reshape(-1, 2))
        str_list.append(
            jnp.full((in_h * in_w, 1), float(stride), dtype=jnp.float32))
    predictions = jnp.concatenate(preds, axis=1)
    pred_regs = predictions[..., : 4 * REG_MAX]
    pred_scores = predictions[..., 4 * REG_MAX:]
    anc = jnp.concatenate(anc_list, 0)
    strides = jnp.concatenate(str_list, 0)
    b, a, c = pred_regs.shape
    proj = jnp.arange(REG_MAX, dtype=jnp.float32)
    dist = jax.nn.softmax(
        pred_regs.reshape(b, a, 4, c // 4).astype(jnp.float32), axis=3) @ proj
    lt, rb = dist[..., :2], dist[..., 2:]
    bboxes = jnp.concatenate([anc - lt, anc + rb], axis=-1)
    return jnp.concatenate(
        [bboxes * strides, jax.nn.sigmoid(pred_scores.astype(jnp.float32))],
        axis=-1)


if __name__ == "__main__":
    key = jax.random.PRNGKey(0)
    batch = 2
    class_num = 2
    input_size = (64, 64)                 # (input_w, input_h)
    L = 4 * REG_MAX + class_num           # 66 channels

    # Three scales: strides 8, 16, 32 -> 8x8, 4x4, 2x2 feature maps (A = 84).
    shapes = [(batch, L, 8, 8), (batch, L, 4, 4), (batch, L, 2, 2)]
    keys = jax.random.split(key, len(shapes))
    outputs = [jax.random.normal(k, s, dtype=jnp.float32)
               for k, s in zip(keys, shapes)]

    result = onnx_decode(outputs, input_size, class_num=class_num)
    result = jax.block_until_ready(result)

    ref = _reference_decode(outputs, input_size, class_num=class_num)
    assert result.shape == ref.shape, (result.shape, ref.shape)
    assert jnp.allclose(result, ref, atol=1e-4, rtol=1e-4), (
        float(jnp.max(jnp.abs(result - ref))))

    print("KERNEL_OK")
</pallas_src>

<mosaic_0001>
module attributes {stable_mosaic.version = 11 : i64} {
  func.func @_decode_kernel(%arg0: i32, %arg1: i32, %arg2: memref<8x64xf32, #tpu.memory_space<vmem>>, %arg3: memref<1x66x128xf32, #tpu.memory_space<vmem>>, %arg4: memref<4x128xf32, #tpu.memory_space<vmem>>, %arg5: memref<1x6x128xf32, #tpu.memory_space<vmem>>) attributes {dimension_semantics = [#tpu.dimension_semantics<parallel>, #tpu.dimension_semantics<parallel>], iteration_bounds = array<i64: 1, 2>, scalar_prefetch = 0 : i64, scratch_operands = 0 : i64, tpu.core_type = #tpu.core_type<tc>, window_params = [{pipeline_mode = #tpu.pipeline_mode<synchronous>, transform_indices = @transform_0, window_bounds = array<i64: 8, 64>}, {transform_indices = @transform_1, window_bounds = array<i64: 1, 66, 128>}, {transform_indices = @transform_2, window_bounds = array<i64: 4, 128>}, {transform_indices = @transform_3, window_bounds = array<i64: 1, 6, 128>}]} {
    %c0 = arith.constant 0 : index
    %c0_0 = arith.constant 0 : index
    %c0_1 = arith.constant 0 : index
    %0 = vector.load %arg3[%c0, %c0_0, %c0_1] : memref<1x66x128xf32, #tpu.memory_space<vmem>>, vector<1x64x128xf32>
    %1 = vector.shape_cast %0 : vector<1x64x128xf32> to vector<64x128xf32>
    %c0_2 = arith.constant 0 : index
    %c64 = arith.constant 64 : index
    %c0_3 = arith.constant 0 : index
    %2 = vector.load %arg3[%c0_2, %c64, %c0_3] : memref<1x66x128xf32, #tpu.memory_space<vmem>>, vector<1x2x128xf32>
    %3 = vector.shape_cast %2 : vector<1x2x128xf32> to vector<2x128xf32>
    %cst = arith.constant dense<0xFF800000> : vector<128xf32>
    %4 = vector.multi_reduction <maximumf>, %1, %cst [0] : vector<64x128xf32> to vector<128xf32>
    %5 = vector.shape_cast %4 : vector<128xf32> to vector<1x128xf32>
    %6 = vector.broadcast %5 : vector<1x128xf32> to vector<64x128xf32>
    %7 = arith.subf %1, %6 : vector<64x128xf32>
    %8 = math.exp %7 : vector<64x128xf32>
    %c0_4 = arith.constant 0 : index
    %c0_5 = arith.constant 0 : index
    %9 = vector.load %arg2[%c0_4, %c0_5] : memref<8x64xf32, #tpu.memory_space<vmem>>, vector<8x64xf32>
    %cst_6 = arith.constant dense<0.000000e+00> : vector<8x128xf32>
    %10 = tpu.matmul %9, %8, %cst_6 {dimension_numbers = #tpu.dot_dimension_numbers<[1], [0], [0], [1], [0, 0, 1, 1], [], []>} : vector<8x64xf32>, vector<64x128xf32>, vector<8x128xf32> -> vector<8x128xf32>
    %11 = vector.extract_strided_slice %10 {offsets = [0, 0], sizes = [4, 128], strides = [1, 1]} : vector<8x128xf32> to vector<4x128xf32>
    %12 = vector.extract_strided_slice %10 {offsets = [4, 0], sizes = [4, 128], strides = [1, 1]} : vector<8x128xf32> to vector<4x128xf32>
    %13 = arith.divf %11, %12 : vector<4x128xf32>
    %c0_7 = arith.constant 0 : index
    %c0_8 = arith.constant 0 : index
    %14 = vector.load %arg4[%c0_7, %c0_8] : memref<4x128xf32, #tpu.memory_space<vmem>>, vector<2x128xf32>
    %c2 = arith.constant 2 : index
    %c0_9 = arith.constant 0 : index
    %15 = vector.load %arg4[%c2, %c0_9] : memref<4x128xf32, #tpu.memory_space<vmem>>, vector<2x128xf32>
    %16 = vector.extract_strided_slice %13 {offsets = [0, 0], sizes = [2, 128], strides = [1, 1]} : vector<4x128xf32> to vector<2x128xf32>
    %17 = arith.mulf %16, %15 : vector<2x128xf32>
    %18 = arith.subf %14, %17 : vector<2x128xf32>
    %c0_10 = arith.constant 0 : index
    %c0_11 = arith.constant 0 : index
    %c0_12 = arith.constant 0 : index
    %19 = vector.load %arg5[%c0_10, %c0_11, %c0_12] : memref<1x6x128xf32, #tpu.memory_space<vmem>>, vector<1x2x128xf32>
    %20 = vector.shape_cast %19 : vector<1x2x128xf32> to vector<2x128xf32>
    %21 = vector.shape_cast %18 : vector<2x128xf32> to vector<1x2x128xf32>
    tpu.vector_store %arg5[%c0_10, %c0_11, %c0_12], %21 {strides = array<i32>} : memref<1x6x128xf32, #tpu.memory_space<vmem>>, vector<1x2x128xf32>,
    %22 = vector.extract_strided_slice %13 {offsets = [2, 0], sizes = [2, 128], strides = [1, 1]} : vector<4x128xf32> to vector<2x128xf32>
    %23 = arith.mulf %22, %15 : vector<2x128xf32>
    %24 = arith.addf %14, %23 : vector<2x128xf32>
    %c0_13 = arith.constant 0 : index
    %c2_14 = arith.constant 2 : index
    %c0_15 = arith.constant 0 : index
    %25 = vector.load %arg5[%c0_13, %c2_14, %c0_15] : memref<1x6x128xf32, #tpu.memory_space<vmem>>, vector<1x2x128xf32>
    %26 = vector.shape_cast %25 : vector<1x2x128xf32> to vector<2x128xf32>
    %27 = vector.shape_cast %24 : vector<2x128xf32> to vector<1x2x128xf32>
    tpu.vector_store %arg5[%c0_13, %c2_14, %c0_15], %27 {strides = array<i32>} : memref<1x6x128xf32, #tpu.memory_space<vmem>>, vector<1x2x128xf32>,
    %28 = arith.negf %3 : vector<2x128xf32>
    %29 = math.exp %28 : vector<2x128xf32>
    %cst_16 = arith.constant 1.000000e+00 : f32
    %30 = vector.broadcast %cst_16 : f32 to vector<2x128xf32>
    %31 = arith.addf %30, %29 : vector<2x128xf32>
    %32 = arith.divf %30, %31 : vector<2x128xf32>
    %c0_17 = arith.constant 0 : index
    %c4 = arith.constant 4 : index
    %c0_18 = arith.constant 0 : index
    %33 = vector.load %arg5[%c0_17, %c4, %c0_18] : memref<1x6x128xf32, #tpu.memory_space<vmem>>, vector<1x2x128xf32>
    %34 = vector.shape_cast %33 : vector<1x2x128xf32> to vector<2x128xf32>
    %35 = vector.shape_cast %32 : vector<2x128xf32> to vector<1x2x128xf32>
    tpu.vector_store %arg5[%c0_17, %c4, %c0_18], %35 {strides = array<i32>} : memref<1x6x128xf32, #tpu.memory_space<vmem>>, vector<1x2x128xf32>,
    return
  }
  func.func @transform_0(%arg0: i32, %arg1: i32) -> (i32, i32) {
    %c0_i32 = arith.constant 0 : i32
    %c0_i32_0 = arith.constant 0 : i32
    %c0_i32_1 = arith.constant 0 : i32
    return %c0_i32, %c0_i32_0 : i32, i32
  }
  func.func @transform_1(%arg0: i32, %arg1: i32) -> (i32, i32, i32) {
    %c0_i32 = arith.constant 0 : i32
    %c0_i32_0 = arith.constant 0 : i32
    return %arg1, %c0_i32, %arg0 : i32, i32, i32
  }
  func.func @transform_2(%arg0: i32, %arg1: i32) -> (i32, i32) {
    %c0_i32 = arith.constant 0 : i32
    %c0_i32_0 = arith.constant 0 : i32
    return %c0_i32, %arg0 : i32, i32
  }
  func.func @transform_3(%arg0: i32, %arg1: i32) -> (i32, i32, i32) {
    %c0_i32 = arith.constant 0 : i32
    %c0_i32_0 = arith.constant 0 : i32
    return %arg1, %c0_i32, %arg0 : i32, i32, i32
  }
}

</mosaic_0001>

<llo_original>
// kernel: tpu_custom_call.1
$region0: #{tpu_custom_call.1}
  #allocation0 [shape = 'u32[]', space=smem, size = 0x4, offset = 0x4, fixed_abs, tag = 'smem constant byte address 0x4 - core index']
  #allocation1 [shape = 'u32[144,128]{1,0:T(1,128)}', space=vmem, size = 0x12000, scoped, tag = 'internal scratch']
  %s0 = inlined_call_operand.vmem [shape: f32[8,64], index: 0, kind: input, shape index: {}]
  %s1 = inlined_call_operand.vmem [shape: f32[2,66,128], index: 1, kind: input, shape index: {}]
  %s2 = inlined_call_operand.vmem [shape: f32[4,128], index: 2, kind: input, shape index: {}]
  %s3 = inlined_call_operand.vmem [shape: f32[2,6,128], index: 3, kind: output, shape index: {}]
  %s4 = sld [smem:[#allocation0]]
  $region45: #{tpu_custom_call.1} parent=0
    _
  %s6 = ssub.s32 1, %s4
  %s7 = scalar_select 0, %s6, %s4
  loop: start=0, step=1, limit=4
  $region2: #{tpu_custom_call.1} parent=0 // loop_pre_header
    _
  $region3: #{tpu_custom_call.1} parent=0 // loop_header
    %s9 = sphi 0, %s13
    %p10 = scmp.ge.s32.totalorder %s9, 4
    %s16 = sphi 0, %s28
    %s17 = sphi 0, %s24
    %s18 = sphi 0, %s16
    %s19 = sphi 0, %s17
    %s20 = sphi 0, %s18
    %s21 = sphi 0, %s19
    %s29 = sphi 0, %s29
    %s31 = sphi 0, %s29
    %s32 = sphi 0, %s31
    %s46 = sphi 0, %s32
    %s54 = sphi 0, %s56
    %s57 = sphi 0, %s54
    %s58 = sphi 0, %s57
    %s74 = sphi 0, %s58
    %s80 = sphi 0, %s82
    %s83 = sphi 0, %s80
    %s84 = sphi 0, %s83
    %s100 = sphi 0, %s84
    %s108 = sphi 0, %s110
    %s111 = sphi 0, %s108
    %s112 = sphi 0, %s111
    %s128 = sphi 0, %s112
  $region4: #{tpu_custom_call.1} parent=0 // loop_header_branch
    %12 = sbr.rel (%p10) target = $region8
  $region5: #{tpu_custom_call.1} parent=0 // loop_body
    %s14 = ssub.s32 %s9, 1
    %s15 = ssub.s32 %s9, 2
    %s22 = sadd.s32 1, %s17
    %p23 = scmp.ge.s32.totalorder %s22, 2
    %s24 = scalar_select %p23, 0, %s22
    %s25 = sadd.s32 1, %s16
    %s26 = scalar_select %p23, %s25, %s16
    %p27 = scmp.ge.s32.totalorder %s26, 1
    %s28 = scalar_select %p27, 0, %s26
    %s30 = sadd.s32 %s29, 1
    %p33 = scmp.eq.s32.totalorder %s9, 1
    %p34 = scmp.ne.s32.totalorder %s29, %s31
    %p35 = scmp.eq.s32.totalorder %s9, 0
    %p36 = por %p34, %p35
    %p37 = scmp.ne.s32.totalorder %s29, %s31
    %p38 = scmp.eq.s32.totalorder %s14, 1
    %p39 = por %p37, %p38
    %p40 = scmp.ne.s32.totalorder %s31, %s32
    %p41 = scmp.eq.s32.totalorder %s14, 0
    %p42 = por %p40, %p41
    %p43 = scmp.ne.s32.totalorder %s31, %s32
    %p44 = scmp.eq.s32.totalorder %s15, 1
    %p45 = por %p43, %p44
    %p47 = scmp.ne.s32.totalorder %s32, %s46
    %p48 = scmp.eq.s32.totalorder %s15, 0
    %p49 = por %p47, %p48
    %s50 = ssub.s32 %s17, %s24
    %s51 = ssub.s32 %s16, %s28
    %s52 = sor.u32 %s50, %s51
    %p53 = scmp.eq.s32.totalorder %s52, 0
    %s55 = sadd.s32 %s54, 1
    %s56 = scalar_select %p53, %s54, %s55
    %p59 = pneg %p53
    %p60 = scmp.eq.s32.totalorder %s9, 1
    %p61 = por %p59, %p60
    %p62 = scmp.ne.s32.totalorder %s54, %s57
    %p63 = scmp.eq.s32.totalorder %s9, 0
    %p64 = por %p62, %p63
    %p65 = scmp.ne.s32.totalorder %s54, %s57
    %p66 = scmp.eq.s32.totalorder %s14, 1
    %p67 = por %p65, %p66
    %p68 = scmp.ne.s32.totalorder %s57, %s58
    %p69 = scmp.eq.s32.totalorder %s14, 0
    %p70 = por %p68, %p69
    %p71 = scmp.ne.s32.totalorder %s57, %s58
    %p72 = scmp.eq.s32.totalorder %s15, 1
    %p73 = por %p71, %p72
    %p75 = scmp.ne.s32.totalorder %s58, %s74
    %p76 = scmp.eq.s32.totalorder %s15, 0
    %p77 = por %p75, %p76
    %s78 = ssub.s32 %s16, %s28
    %p79 = scmp.eq.s32.totalorder %s78, 0
    %s81 = sadd.s32 %s80, 1
    %s82 = scalar_select %p79, %s80, %s81
    %p85 = pneg %p79
    %p86 = scmp.eq.s32.totalorder %s9, 1
    %p87 = por %p85, %p86
    %p88 = scmp.ne.s32.totalorder %s80, %s83
    %p89 = scmp.eq.s32.totalorder %s9, 0
    %p90 = por %p88, %p89
    %p91 = scmp.ne.s32.totalorder %s80, %s83
    %p92 = scmp.eq.s32.totalorder %s14, 1
    %p93 = por %p91, %p92
    %p94 = scmp.ne.s32.totalorder %s83, %s84
    %p95 = scmp.eq.s32.totalorder %s14, 0
    %p96 = por %p94, %p95
    %p97 = scmp.ne.s32.totalorder %s83, %s84
    %p98 = scmp.eq.s32.totalorder %s15, 1
    %p99 = por %p97, %p98
    %p101 = scmp.ne.s32.totalorder %s84, %s100
    %p102 = scmp.eq.s32.totalorder %s15, 0
    %p103 = por %p101, %p102
    %s104 = ssub.s32 %s17, %s24
    %s105 = ssub.s32 %s16, %s28
    %s106 = sor.u32 %s104, %s105
    %p107 = scmp.eq.s32.totalorder %s106, 0
    %s109 = sadd.s32 %s108, 1
    %s110 = scalar_select %p107, %s108, %s109
    %p113 = pneg %p107
    %p114 = scmp.eq.s32.totalorder %s9, 1
    %p115 = por %p113, %p114
    %p116 = scmp.ne.s32.totalorder %s108, %s111
    %p117 = scmp.eq.s32.totalorder %s9, 0
    %p118 = por %p116, %p117
    %p119 = scmp.ne.s32.totalorder %s108, %s111
    %p120 = scmp.eq.s32.totalorder %s14, 1
    %p121 = por %p119, %p120
    %p122 = scmp.ne.s32.totalorder %s111, %s112
    %p123 = scmp.eq.s32.totalorder %s14, 0
    %p124 = por %p122, %p123
    %p125 = scmp.ne.s32.totalorder %s111, %s112
    %p126 = scmp.eq.s32.totalorder %s15, 1
    %p127 = por %p125, %p126
    %p129 = scmp.ne.s32.totalorder %s112, %s128
    %p130 = scmp.eq.s32.totalorder %s15, 0
    %p131 = por %p129, %p130
    %p132 = scmp.le.s32.totalorder 1, %s9
    %p133 = scmp.lt.s32.totalorder %s9, 3
    %p134 = pnand %p132, %p133
    %p135 = pneg %p134
    // Predicated region
    $region9: #{tpu_custom_call.1} parent=5 // pred_check
      _
    $region10: #{tpu_custom_call.1} parent=5 // pred_check_branch
      %137 = sbr.rel (%p134) target = $region12
    $region11: #{tpu_custom_call.1} parent=5 // pred_region
      %s138 = ssub.s32 %s9, 1
      // Predicated region
      $region13: #{tpu_custom_call.1} parent=11 // pred_check
        %p139 = pneg %p42
      $region14: #{tpu_custom_call.1} parent=11 // pred_check_branch
        %141 = sbr.rel (%p139) target = $region16
      $region15: #{tpu_custom_call.1} parent=11 // pred_region
        _
      $region16: #{tpu_custom_call.1} parent=11 // pred_fallthru
        _
      // Predicated region
      $region17: #{tpu_custom_call.1} parent=11 // pred_check
        %p142 = pneg %p96
      $region18: #{tpu_custom_call.1} parent=11 // pred_check_branch
        %144 = sbr.rel (%p142) target = $region20
      $region19: #{tpu_custom_call.1} parent=11 // pred_region
        %p145 = scmp.lt.s32.totalorder %s18, 0
        %s146 = scalar_select %p145, %s18, 0
        %s147 = smul.addr %s146, 4
        %s148 = scalar_lea.vmem %s2, %s147
      $region20: #{tpu_custom_call.1} parent=11 // pred_fallthru
        _
    $region12: #{tpu_custom_call.1} parent=5 // pred_fallthru
      _
    %p149 = scmp.lt.s32.totalorder %s9, 2
    // Predicated region
    $region21: #{tpu_custom_call.1} parent=5 // pred_check
      %p150 = pneg %p149
    $region22: #{tpu_custom_call.1} parent=5 // pred_check_branch
      %152 = sbr.rel (%p150) target = $region24
    $region23: #{tpu_custom_call.1} parent=5 // pred_region
      // Predicated region
      $region25: #{tpu_custom_call.1} parent=23 // pred_check
        %p153 = pneg %p64
      $region26: #{tpu_custom_call.1} parent=23 // pred_check_branch
        %155 = sbr.rel (%p153) target = $region28
      $region27: #{tpu_custom_call.1} parent=23 // pred_region
        %p156 = scmp.lt.s32.totalorder %s17, 1
        %s157 = scalar_select %p156, %s17, 1
        %p158 = scmp.lt.s32.totalorder %s16, 0
        %s159 = scalar_select %p158, %s16, 0
        %s160 = smul.addr %s157, 9
        %s161 = sadd.s32 %s159, %s160
        %s162 = smul.addr %s161, 8
        %s163 = scalar_lea.vmem %s1, %s162
      $region28: #{tpu_custom_call.1} parent=23 // pred_fallthru
        _
    $region24: #{tpu_custom_call.1} parent=5 // pred_fallthru
      _
    %p164 = scmp.le.s32.totalorder 1, %s9
    %p165 = scmp.lt.s32.totalorder %s9, 3
    %p166 = pnand %p164, %p165
    %p167 = pneg %p166
    // Predicated region
    $region29: #{tpu_custom_call.1} parent=5 // pred_check
      _
    $region30: #{tpu_custom_call.1} parent=5 // pred_check_branch
      %169 = sbr.rel (%p166) target = $region32
    $region31: #{tpu_custom_call.1} parent=5 // pred_region
      %s170 = ssub.s32 %s9, 1
      %p171 = pneg %p42
      %p172 = pneg %p39
      %p173 = scmp.lt.s32.totalorder %s19, 1
      %s174 = scalar_select %p173, %s19, 1
      %p175 = scmp.lt.s32.totalorder %s18, 0
      %s176 = scalar_select %p175, %s18, 0
      %s177 = smul.addr %s174, 9
      %s178 = sadd.s32 %s176, %s177
      %s179 = smul.addr %s178, 8
      %s180 = scalar_lea.vmem %s1, %s179
      %p181 = pneg %p70
      %p182 = pneg %p67
      %p183 = scmp.lt.s32.totalorder %s18, 0
      %s184 = scalar_select %p183, %s18, 0
      %s185 = smul.addr %s184, 4
      %s186 = scalar_lea.vmem %s2, %s185
      %p187 = pneg %p96
      %p188 = pneg %p93
      %p189 = pneg %p124
      %p190 = pneg %p121
      %p191 = scmp.lt.s32.totalorder %s19, 1
      %s192 = scalar_select %p191, %s19, 1
      %p193 = scmp.lt.s32.totalorder %s18, 0
      %s194 = scalar_select %p193, %s18, 0
      %s195 = sadd.s32 %s194, %s192
      %s196 = smul.addr %s195, 8
      %s197 = scalar_lea.vmem %s3, %s196
      %p198 = scmp.lt.s32.totalorder %s19, 1
      %s199 = scalar_select %p198, %s19, 1
      %p200 = scmp.lt.s32.totalorder %s18, 0
      %s201 = scalar_select %p200, %s18, 0
      %s202 = smul.addr %s199, 9
      %s203 = sadd.s32 %s201, %s202
      %s204 = smul.addr %s203, 8
      %s205 = scalar_lea.vmem %s1, %s204
      %p206 = scmp.lt.s32.totalorder %s18, 0
      %s207 = scalar_select %p206, %s18, 0
      %s208 = smul.addr %s207, 4
      %s209 = scalar_lea.vmem %s2, %s208
      %p210 = scmp.lt.s32.totalorder %s19, 1
      %s211 = scalar_select %p210, %s19, 1
      %p212 = scmp.lt.s32.totalorder %s18, 0
      %s213 = scalar_select %p212, %s18, 0
      %s214 = sadd.s32 %s213, %s211
      %s215 = smul.addr %s214, 8
      %s216 = scalar_lea.vmem %s3, %s215
      %v217 = vld [vmem:[%s205] sm:$0xff]
      %v218 = vld [vmem:[%s205 + $0x8] sm:$0xff]
      %v219 = vld [vmem:[%s205 + $0x10] sm:$0xff]
      %v220 = vld [vmem:[%s205 + $0x18] sm:$0xff]
      %v221 = vld [vmem:[%s205 + $0x20] sm:$0xff]
      %v222 = vld [vmem:[%s205 + $0x28] sm:$0xff]
      %v223 = vld [vmem:[%s205 + $0x30] sm:$0xff]
      %v224 = vld [vmem:[%s205 + $0x38] sm:$0xff]
      %v225 = vld [vmem:[%s205 + $0x40] sm:$0x3]
      %v226 = vmax.f32 %v217, %v221
      %v227 = vmax.f32 %v218, %v222
      %v228 = vmax.f32 %v219, %v223
      %v229 = vmax.f32 %v220, %v224
      %v230 = vmax.f32 %v226, %v227
      %v231 = vmax.f32 %v228, %v229
      %v232 = vmax.f32 %v230, %v231
      %v233 = vrot.slane %v232, 4
      %v234 = vmax.f32 %v232, %v233
      %v235 = vrot.slane %v234, 2
      %v236 = vmax.f32 %v234, %v235
      %v237 = vrot.slane %v236, 1
      %v238 = vmax.f32 %v236, %v237
      %v239 = vsub.f32 %v217, %v238
      %v240 = vsub.f32 %v218, %v238
      %v241 = vsub.f32 %v219, %v238
      %v242 = vsub.f32 %v220, %v238
      %v243 = vsub.f32 %v221, %v238
      %v244 = vsub.f32 %v222, %v238
      %v245 = vsub.f32 %v223, %v238
      %v246 = vsub.f32 %v224, %v238
      %v247 = vmul.f32 %v239, 1.442695
      %v248 = vpow.pop %v247
      %v249 = vmul.f32 %v240, 1.442695
      %v250 = vpow.pop %v249
      %v251 = vmul.f32 %v241, 1.442695
      %v252 = vpow.pop %v251
      %v253 = vmul.f32 %v242, 1.442695
      %v254 = vpow.pop %v253
      %v255 = vmul.f32 %v243, 1.442695
      %v256 = vpow.pop %v255
      %v257 = vmul.f32 %v244, 1.442695
      %v258 = vpow.pop %v257
      %v259 = vmul.f32 %v245, 1.442695
      %v260 = vpow.pop %v259
      %v261 = vmul.f32 %v246, 1.442695
      %v262 = vpow.pop %v261
      %v263 = vld [vmem:[%s0] sm:$0xff]
      %vm264 = vcmask 523264
      %v266 = vsel %vm264, %v263, 0
      %268 = vmatprep.subr.mxu0 0.0
      %269 = vmatpush1.msra.mxu0 %v248
      %270 = vmatprep.subr.mxu0 0.0
      %271 = vmatpush1.msra.mxu0 %v250
      %272 = vmatprep.subr.mxu0 0.0
      %273 = vmatpush1.msra.mxu0 %v252
      %274 = vmatprep.subr.mxu0 0.0
      %275 = vmatpush1.msra.mxu0 %v254
      %276 = vmatprep.subr.mxu0 0.0
      %277 = vmatpush1.msra.mxu0 %v256
      %278 = vmatprep.subr.mxu0 0.0
      %279 = vmatpush1.msra.mxu0 %v258
      %280 = vmatprep.subr.mxu0 0.0
      %281 = vmatpush1.msra.mxu0 %v260
      %282 = vmatprep.subr.mxu0 0.0
      %283 = vmatpush1.msra.mxu0 %v262
      %284 = vmatprep.subr.mxu0 0.0
      %285 = vmatpush1.msra.mxu0 0.0
      %286 = vmatprep.subr.mxu0 0.0
      %287 = vmatpush1.msra.mxu0 0.0
      %288 = vmatprep.subr.mxu0 0.0
      %289 = vmatpush1.msra.mxu0 0.0
      %290 = vmatprep.subr.mxu0 0.0
      %291 = vmatpush1.msra.mxu0 0.0
      %292 = vmatprep.subr.mxu0 0.0
      %293 = vmatpush1.msra.mxu0 0.0
      %294 = vmatprep.subr.mxu0 0.0
      %295 = vmatpush1.msra.mxu0 0.0
      %296 = vmatprep.subr.mxu0 0.0
      %297 = vmatpush1.msra.mxu0 0.0
      %298 = vmatprep.subr.mxu0 0.0
      %299 = vmatpush1.msra.mxu0 0.0
      %300 = vmatprep.subr.mxu0 0.0
      %301 = vmatpush1.msra.mxu0 0.0
      %302 = vmatprep.subr.mxu0 0.0
      %303 = vmatpush1.msra.mxu0 0.0
      %304 = vmatprep.subr.mxu0 0.0
      %305 = vmatpush1.msra.mxu0 0.0
      %306 = vmatprep.subr.mxu0 0.0
      %307 = vmatpush1.msra.mxu0 0.0
      %308 = vmatprep.subr.mxu0 0.0
      %309 = vmatpush1.msra.mxu0 0.0
      %310 = vmatprep.subr.mxu0 0.0
      %311 = vmatpush1.msra.mxu0 0.0
      %312 = vmatprep.subr.mxu0 0.0
      %313 = vmatpush1.msra.mxu0 0.0
      %314 = vmatprep.subr.mxu0 0.0
      %315 = vmatpush1.msra.mxu0 0.0
      %316 = vmatprep.subr.mxu0 0.0
      %317 = vmatpush1.msra.mxu0 0.0
      %318 = vmatprep.subr.mxu0 0.0
      %319 = vmatpush1.msra.mxu0 0.0
      %320 = vmatprep.subr.mxu0 0.0
      %321 = vmatpush1.msra.mxu0 0.0
      %322 = vmatprep.subr.mxu0 0.0
      %323 = vmatpush1.msra.mxu0 0.0
      %324 = vmatprep.subr.mxu0 0.0
      %325 = vmatpush1.msra.mxu0 0.0
      %326 = vmatprep.subr.mxu0 0.0
      %327 = vmatpush1.msra.mxu0 0.0
      %328 = vmatprep.subr.mxu0 0.0
      %329 = vmatpush1.msra.mxu0 0.0
      %330 = vmatprep.subr.mxu0 0.0
      %331 = vmatpush1.msra.mxu0 0.0
      %332 = vmatprep.mubr.f32.mxu0 0.0
      %333 = vmatmul.mubr.f32.gmra.mrb[0].mxu0 %v266
      %v334 = vpop.f32.mrb[0].mxu0
      %v335 = vadd.f32 0.0, %v334
      %v336 = vpop.f32.mrb[0].mxu0
      %337 = vdwg.mxu0
      %v339 = vrot.slane %v335, 4
      %v341 = vrcp.pop %v339
      %v342 = vmul.f32 %v335, %v341
      %v343 = vld [vmem:[%s209] sm:$0x3]
      %v344 = vld [vmem:[%s209 + $0x2] sm:$0x3]
      %v345 = vmul.f32 %v342, %v344
      %v346 = vsub.f32 %v343, %v345
      %347 = vst [vmem:[%s216] sm:$0x3] %v346
      %v349 = vrot.slane %v344, 6
      %v351 = vmul.f32 %v342, %v349
      %v353 = vrot.slane %v351, 2
      %v355 = vadd.f32 %v343, %v353
      %356 = vst [vmem:[%s216 + $0x2] sm:$0x3] %v355
      %v357 = vxor.u32 %v225, 2147483648
      %v358 = vmul.f32 %v357, 1.442695
      %v359 = vpow.pop %v358
      %v360 = vadd.f32 %v359, 1.0
      %v361 = vrcp.pop %v360
      %v362 = vmul.f32 1.0, %v361
      %363 = vst [vmem:[%s216 + $0x4] sm:$0x3] %v362
      %p364 = scmp.lt.s32.totalorder %s19, 1
      %s365 = scalar_select %p364, %s19, 1
      %p366 = scmp.lt.s32.totalorder %s18, 0
      %s367 = scalar_select %p366, %s18, 0
      %s368 = sadd.s32 %s367, %s365
      %s369 = smul.addr %s368, 8
      %s370 = scalar_lea.vmem %s3, %s369
      // Predicated region
      $region33: #{tpu_custom_call.1} parent=31 // pred_check
        %p371 = pneg %p121
      $region34: #{tpu_custom_call.1} parent=31 // pred_check_branch
        %373 = sbr.rel (%p371) target = $region36
      $region35: #{tpu_custom_call.1} parent=31 // pred_region
        _
      $region36: #{tpu_custom_call.1} parent=31 // pred_fallthru
        _
    $region32: #{tpu_custom_call.1} parent=5 // pred_fallthru
      _
    %p374 = scmp.le.s32.totalorder 2, %s9
    // Predicated region
    $region37: #{tpu_custom_call.1} parent=5 // pred_check
      %p375 = pneg %p374
    $region38: #{tpu_custom_call.1} parent=5 // pred_check_branch
      %377 = sbr.rel (%p375) target = $region40
    $region39: #{tpu_custom_call.1} parent=5 // pred_region
      %s378 = ssub.s32 %s9, 2
      // Predicated region
      $region41: #{tpu_custom_call.1} parent=39 // pred_check
        %p379 = pneg %p127
      $region42: #{tpu_custom_call.1} parent=39 // pred_check_branch
        %381 = sbr.rel (%p379) target = $region44
      $region43: #{tpu_custom_call.1} parent=39 // pred_region
        %p382 = scmp.lt.s32.totalorder %s21, 1
        %s383 = scalar_select %p382, %s21, 1
        %p384 = scmp.lt.s32.totalorder %s20, 0
        %s385 = scalar_select %p384, %s20, 0
        %s386 = sadd.s32 %s385, %s383
        %s387 = smul.addr %s386, 8
        %s388 = scalar_lea.vmem %s3, %s387
      $region44: #{tpu_custom_call.1} parent=39 // pred_fallthru
        _
    $region40: #{tpu_custom_call.1} parent=5 // pred_fallthru
      _
  $region6: #{tpu_custom_call.1} parent=0 // loop_footer
    %s13 = sadd.s32 1, %s9
  $region7: #{tpu_custom_call.1} parent=0 // loop_footer_branch
    %8 = sbr.rel target = $region3
  $region8: #{tpu_custom_call.1} parent=0 // loop_exit
    _

</llo_original>
